<compile_context>
chip_gen: v7x
topology: tpu7x:2x2x1
jax: 0.10.0
libtpu: 0.0.40
codegen_flags: <defaults>
</compile_context>

<pallas_src>
import functools

import jax
import jax.numpy as jnp
from jax.experimental import pallas as pl
from jax.experimental.pallas import tpu as pltpu


def _round_up(x, m):
    return (x + m - 1) // m * m


def _vmem_capacity_bytes():
    """Physical VMEM per core (v5e/v6e: 128 MiB, v7x: 64 MiB), with fallback."""
    try:
        info = pltpu.get_tpu_info()
        cap = getattr(info, "vmem_capacity_bytes", None)
        if cap:
            return int(cap)
    except Exception:
        pass
    return 64 * 1024 * 1024   # conservative fallback (v7x per-core)


def _global_attention_kernel(x_ref, w1_ref, b1_ref, w2_ref, out_ref, wts_ref,
                             *, s_valid):
    bb, s, hdim = x_ref.shape
    d1p = w1_ref.shape[1]

    x = x_ref[...]                                            # (BB, S, H), stored dtype
    xf = x.astype(jnp.float32)                                # free when x is already f32

    # Fuse the batch block into one large-M matmul (layout no-op: S % 8 == 0
    # is guaranteed by the wrapper).
    x2 = xf.reshape(bb * s, hdim)                             # (BB*S, H)

    # Linear -> ReLU  (MXU + VPU); D1 padded to a lane-aligned width.
    h = jnp.dot(x2, w1_ref[...], preferred_element_type=jnp.float32)
    h = jnp.maximum(h + b1_ref[...], 0.0)                     # (BB*S, D1p)

    # Second linear has a single output column -> VPU multiply + lane reduce
    # instead of a degenerate N=1 MXU matmul. Reduce WITHOUT keepdims so the
    # energies land in a lane-dense (BB, S) layout for the softmax.
    h3 = h.reshape(bb, s, d1p)                                # (BB, S, D1p)
    e = jnp.sum(h3 * w2_ref[...], axis=-1)                    # (BB, S)  lane-dense

    # Mask padded sequence positions (only present if the wrapper padded S).
    if s_valid < s:
        col = jax.lax.broadcasted_iota(jnp.int32, (bb, s), 1)
        e = jnp.where(col < s_valid, e, -jnp.inf)

    # Softmax over the sequence axis, entirely lane-dense.
    m = jnp.max(e, axis=-1, keepdims=True)                    # (BB, 1)
    p = jnp.exp(e - m)                                        # (BB, S)
    denom = jnp.sum(p, axis=-1, keepdims=True)                # (BB, 1)
    # exact reciprocal kept so the 1e-5 tolerance vs. the f32 reference holds
    w = p * pl.reciprocal(denom, approx=False)                # (BB, S)

    # Attention weights: plain lane-dense store (no XLU swap).
    wts_ref[...] = w

    # Weighted sum over the sequence: broadcast multiply + sublane reduce
    # (avoids BB separate M=1 matmuls on the MXU).
    out = jnp.sum(xf * w[:, :, None], axis=1)                 # (BB, H) f32
    out_ref[...] = out.astype(out_ref.dtype)


def _pick_block_b(B, S, H, D1p, x_itemsize):
    """Largest BB (multiple of 8) whose full per-step footprint fits VMEM."""
    cap = _vmem_capacity_bytes()
    budget = int(cap * 0.70)          # headroom for Mosaic scratch / relayouts
    Hp = _round_up(H, 128)            # lane padding of the minor dim in VMEM
    Sp = _round_up(S, 128)            # lane padding of the (BB, S) softmax path

    # Fixed cost: W1/b1/w2 resident once (memory_space=VMEM, not pipelined).
    fixed = (_round_up(H, 8) * D1p + 2 * 8 * D1p) * 4

    # Per-batch-row cost of one grid step.
    per_row = (2 * S * Hp * x_itemsize      # double-buffered x block
               + S * D1p * 4                # relu(x @ W1) intermediate (f32)
               + 4 * Sp * 4                 # energy / softmax / relayout temps
               + 2 * (Hp + Sp) * 4)         # double-buffered outputs

    bb = max(8, (budget - fixed) // max(per_row, 1) // 8 * 8)
    # Keep the (parallel) grid >= ~8 steps when B is large so the two v7x
    # TensorCores have work to shard and the DMA pipeline stays filled.
    bb = min(bb, max(8, _round_up(pl.cdiv(B, 8), 8)))
    return int(bb)


def _pick_batch_tiling(B, bb_budget):
    """Return (BB, padded_B); avoid the full-array batch pad when possible."""
    if B <= bb_budget:
        return B, B                    # single full-batch block, no padding
    bb_budget = max(8, bb_budget // 8 * 8)
    # Prefer a block (>= half the budget) that divides B: no HBM pad pass.
    bb = bb_budget
    while bb >= max(8, bb_budget // 2):
        if B % bb == 0:
            return bb, B
        bb -= 8
    return bb_budget, _round_up(B, bb_budget)


def global_attention(x, w1, b1, w2, b2=None, *, block_b=None):
    """x: (B, S, H). Returns (outputs (B, H) in x.dtype, weights (B, S) f32)."""
    B, S, H = x.shape
    D1 = w1.shape[1]

    # b2 is accepted for API parity but mathematically a no-op before softmax
    # (shift invariance), so it is not passed to the kernel.
    del b2

    # Zero-pad the projection width to a lane-aligned multiple of 128 (padded
    # columns contribute exactly 0 to the energy). Weights stay f32.
    D1p = _round_up(max(D1, 1), 128)
    f32 = jnp.float32
    w1p = jnp.pad(w1.astype(f32), ((0, 0), (0, D1p - D1)))
    b1p = jnp.pad(jnp.reshape(b1, (1, D1)).astype(f32), ((0, 0), (0, D1p - D1)))
    w2p = jnp.pad(jnp.reshape(w2, (1, D1)).astype(f32), ((0, 0), (0, D1p - D1)))

    # x streams in its stored dtype (bf16 stays bf16 in HBM; no upcast pass).
    xp = x

    # Pad S to a sublane multiple only if needed so the in-kernel reshapes are
    # layout no-ops; padded positions are masked to -inf before the softmax.
    Sp = _round_up(S, 8)
    if Sp != S:
        # TODO(synk): this is one extra HBM pass over x; for ragged S at scale
        # fold the mask into an S-tiled online-softmax variant instead.
        xp = jnp.pad(xp, ((0, 0), (0, Sp - S), (0, 0)))

    bb_budget = (block_b if block_b is not None
                 else _pick_block_b(B, Sp, H, D1p, xp.dtype.itemsize))
    BB, Bp = _pick_batch_tiling(B, bb_budget)
    if Bp != B:
        # Fallback only when no well-sized divisor block exists. Zero-padded
        # batch rows produce finite (uniform-softmax) garbage that is sliced
        # off below; no NaN/Inf can leak into valid rows.
        xp = jnp.pad(xp, ((0, Bp - B), (0, 0), (0, 0)))

    kernel = functools.partial(_global_attention_kernel, s_valid=S)

    grid_spec = pltpu.PrefetchScalarGridSpec(
        num_scalar_prefetch=0,
        grid=(Bp // BB,),
        in_specs=[
            pl.BlockSpec((BB, Sp, H), lambda b: (b, 0, 0)),        # streamed x block
            # Grid-invariant operands: resident once in VMEM (single-buffered),
            # instead of per-step double-buffered pipeline copies.
            pl.BlockSpec(memory_space=pltpu.MemorySpace.VMEM),     # W1 (padded)
            pl.BlockSpec(memory_space=pltpu.MemorySpace.VMEM),     # b1 (padded)
            pl.BlockSpec(memory_space=pltpu.MemorySpace.VMEM),     # w2 row (padded)
        ],
        out_specs=[
            pl.BlockSpec((BB, H), lambda b: (b, 0)),               # outputs
            pl.BlockSpec((BB, Sp), lambda b: (b, 0)),              # weights (lane-dense)
        ],
    )

    out_shapes = (
        jax.ShapeDtypeStruct((Bp, H), x.dtype),
        jax.ShapeDtypeStruct((Bp, Sp), jnp.float32),
    )

    cap = _vmem_capacity_bytes()
    outs, wts = pl.pallas_call(
        kernel,
        out_shape=out_shapes,
        grid_spec=grid_spec,
        compiler_params=pltpu.CompilerParams(
            dimension_semantics=("parallel",),
            vmem_limit_bytes=int(cap * 0.9),
        ),
    )(xp, w1p, b1p, w2p)

    return outs[:B], wts[:B, :S]


def _reference(x, w1, b1, w2, b2):
    # Pure-JAX mirror of the PyTorch forward for validation.
    h = jax.nn.relu(jnp.einsum("bsh,hd->bsd", x, w1) + b1[0])
    e = jnp.einsum("bsd,do->bso", h, w2)[..., 0] + b2[0, 0]     # (B, S)
    w = jax.nn.softmax(e, axis=1)
    out = jnp.sum(x * w[..., None], axis=1)
    return out, w


if __name__ == "__main__":
    # Small shapes consistent with the module: hidden_dim divisible by 5.
    B, S, H = 2, 8, 40
    D1 = H // 5

    key = jax.random.PRNGKey(0)
    kx, k1, k2, k3, k4 = jax.random.split(key, 5)

    x = jax.random.normal(kx, (B, S, H), dtype=jnp.float32)

    # Deterministic parameter init (PyTorch Linear-style uniform bounds).
    bound1 = 1.0 / (H ** 0.5)
    w1 = jax.random.uniform(k1, (H, D1), jnp.float32, -bound1, bound1)
    b1 = jax.random.uniform(k2, (1, D1), jnp.float32, -bound1, bound1)
    bound2 = 1.0 / (D1 ** 0.5)
    w2 = jax.random.uniform(k3, (D1, 1), jnp.float32, -bound2, bound2)
    b2 = jax.random.uniform(k4, (1, 1), jnp.float32, -bound2, bound2)

    out, wts = global_attention(x, w1, b1, w2, b2)
    out, wts = jax.block_until_ready((out, wts))

    ref_out, ref_wts = _reference(x, w1, b1, w2, b2)
    assert jnp.allclose(out, ref_out, atol=1e-5, rtol=1e-5)
    assert jnp.allclose(wts, ref_wts, atol=1e-5, rtol=1e-5)

    print("KERNEL_OK")
</pallas_src>

<mosaic_0001>
module attributes {stable_mosaic.version = 11 : i64} {
  func.func @_global_attention_kernel(%arg0: i32, %arg1: memref<2x8x40xf32, #tpu.memory_space<vmem>>, %arg2: memref<40x128xf32, #tpu.memory_space<vmem>>, %arg3: memref<1x128xf32, #tpu.memory_space<vmem>>, %arg4: memref<1x128xf32, #tpu.memory_space<vmem>>, %arg5: memref<2x40xf32, #tpu.memory_space<vmem>>, %arg6: memref<2x8xf32, #tpu.memory_space<vmem>>) attributes {dimension_semantics = [#tpu.dimension_semantics<parallel>], iteration_bounds = array<i64: 1>, scalar_prefetch = 0 : i64, scratch_operands = 0 : i64, tpu.core_type = #tpu.core_type<tc>, window_params = [{transform_indices = @transform_0, window_bounds = array<i64: 2, 8, 40>}, {pipeline_mode = #tpu.pipeline_mode<synchronous>, transform_indices = @transform_1, window_bounds = array<i64: 40, 128>}, {pipeline_mode = #tpu.pipeline_mode<synchronous>, transform_indices = @transform_2, window_bounds = array<i64: 1, 128>}, {pipeline_mode = #tpu.pipeline_mode<synchronous>, transform_indices = @transform_3, window_bounds = array<i64: 1, 128>}, {transform_indices = @transform_4, window_bounds = array<i64: 2, 40>}, {transform_indices = @transform_5, window_bounds = array<i64: 2, 8>}]} {
    %c0 = arith.constant 0 : index
    %c0_0 = arith.constant 0 : index
    %c0_1 = arith.constant 0 : index
    %0 = vector.load %arg1[%c0, %c0_0, %c0_1] : memref<2x8x40xf32, #tpu.memory_space<vmem>>, vector<2x8x40xf32>
    %1 = vector.shape_cast %0 : vector<2x8x40xf32> to vector<16x40xf32>
    %c0_2 = arith.constant 0 : index
    %c0_3 = arith.constant 0 : index
    %2 = vector.load %arg2[%c0_2, %c0_3] : memref<40x128xf32, #tpu.memory_space<vmem>>, vector<40x128xf32>
    %cst = arith.constant dense<0.000000e+00> : vector<16x128xf32>
    %3 = tpu.matmul %1, %2, %cst {dimension_numbers = #tpu.dot_dimension_numbers<[1], [0], [0], [1], [0, 0, 1, 1], [], []>} : vector<16x40xf32>, vector<40x128xf32>, vector<16x128xf32> -> vector<16x128xf32>
    %c0_4 = arith.constant 0 : index
    %c0_5 = arith.constant 0 : index
    %4 = vector.load %arg3[%c0_4, %c0_5] : memref<1x128xf32, #tpu.memory_space<vmem>>, vector<1x128xf32>
    %5 = vector.broadcast %4 : vector<1x128xf32> to vector<16x128xf32>
    %6 = arith.addf %3, %5 : vector<16x128xf32>
    %cst_6 = arith.constant 0.000000e+00 : f32
    %7 = vector.broadcast %cst_6 : f32 to vector<16x128xf32>
    %8 = arith.maximumf %6, %7 : vector<16x128xf32>
    %9 = vector.shape_cast %8 : vector<16x128xf32> to vector<2x8x128xf32>
    %c0_7 = arith.constant 0 : index
    %c0_8 = arith.constant 0 : index
    %10 = vector.load %arg4[%c0_7, %c0_8] : memref<1x128xf32, #tpu.memory_space<vmem>>, vector<1x128xf32>
    %11 = vector.shape_cast %10 : vector<1x128xf32> to vector<1x1x128xf32>
    %12 = vector.broadcast %11 : vector<1x1x128xf32> to vector<2x8x128xf32>
    %13 = arith.mulf %9, %12 : vector<2x8x128xf32>
    %cst_9 = arith.constant dense<0.000000e+00> : vector<2x8xf32>
    %14 = vector.multi_reduction <add>, %13, %cst_9 [2] : vector<2x8x128xf32> to vector<2x8xf32>
    %cst_10 = arith.constant dense<0xFF800000> : vector<2xf32>
    %15 = vector.multi_reduction <maximumf>, %14, %cst_10 [1] : vector<2x8xf32> to vector<2xf32>
    %16 = vector.shape_cast %15 : vector<2xf32> to vector<2x1xf32>
    %17 = vector.broadcast %16 : vector<2x1xf32> to vector<2x8xf32>
    %18 = arith.subf %14, %17 : vector<2x8xf32>
    %19 = math.exp %18 : vector<2x8xf32>
    %cst_11 = arith.constant dense<0.000000e+00> : vector<2xf32>
    %20 = vector.multi_reduction <add>, %19, %cst_11 [1] : vector<2x8xf32> to vector<2xf32>
    %21 = vector.shape_cast %20 : vector<2xf32> to vector<2x1xf32>
    %22 = tpu.reciprocal %21 : vector<2x1xf32> -> vector<2x1xf32>
    %23 = vector.broadcast %22 : vector<2x1xf32> to vector<2x8xf32>
    %24 = arith.mulf %19, %23 : vector<2x8xf32>
    %c0_12 = arith.constant 0 : index
    %c0_13 = arith.constant 0 : index
    %25 = vector.load %arg6[%c0_12, %c0_13] : memref<2x8xf32, #tpu.memory_space<vmem>>, vector<2x8xf32>
    tpu.vector_store %arg6[%c0_12, %c0_13], %24 {strides = array<i32>} : memref<2x8xf32, #tpu.memory_space<vmem>>, vector<2x8xf32>,
    %26 = vector.shape_cast %24 : vector<2x8xf32> to vector<2x8x1xf32>
    %27 = vector.broadcast %26 : vector<2x8x1xf32> to vector<2x8x40xf32>
    %28 = arith.mulf %0, %27 : vector<2x8x40xf32>
    %cst_14 = arith.constant dense<0.000000e+00> : vector<2x40xf32>
    %29 = vector.multi_reduction <add>, %28, %cst_14 [1] : vector<2x8x40xf32> to vector<2x40xf32>
    %c0_15 = arith.constant 0 : index
    %c0_16 = arith.constant 0 : index
    %30 = vector.load %arg5[%c0_15, %c0_16] : memref<2x40xf32, #tpu.memory_space<vmem>>, vector<2x40xf32>
    tpu.vector_store %arg5[%c0_15, %c0_16], %29 {strides = array<i32>} : memref<2x40xf32, #tpu.memory_space<vmem>>, vector<2x40xf32>,
    return
  }
  func.func @transform_0(%arg0: i32) -> (i32, i32, i32) {
    %c0_i32 = arith.constant 0 : i32
    %c0_i32_0 = arith.constant 0 : i32
    %c0_i32_1 = arith.constant 0 : i32
    return %arg0, %c0_i32, %c0_i32_0 : i32, i32, i32
  }
  func.func @transform_1(%arg0: i32) -> (i32, i32) {
    %c0_i32 = arith.constant 0 : i32
    %c0_i32_0 = arith.constant 0 : i32
    %c0_i32_1 = arith.constant 0 : i32
    return %c0_i32, %c0_i32_0 : i32, i32
  }
  func.func @transform_2(%arg0: i32) -> (i32, i32) {
    %c0_i32 = arith.constant 0 : i32
    %c0_i32_0 = arith.constant 0 : i32
    %c0_i32_1 = arith.constant 0 : i32
    return %c0_i32, %c0_i32_0 : i32, i32
  }
  func.func @transform_3(%arg0: i32) -> (i32, i32) {
    %c0_i32 = arith.constant 0 : i32
    %c0_i32_0 = arith.constant 0 : i32
    %c0_i32_1 = arith.constant 0 : i32
    return %c0_i32, %c0_i32_0 : i32, i32
  }
  func.func @transform_4(%arg0: i32) -> (i32, i32) {
    %c0_i32 = arith.constant 0 : i32
    %c0_i32_0 = arith.constant 0 : i32
    return %arg0, %c0_i32 : i32, i32
  }
  func.func @transform_5(%arg0: i32) -> (i32, i32) {
    %c0_i32 = arith.constant 0 : i32
    %c0_i32_0 = arith.constant 0 : i32
    return %arg0, %c0_i32 : i32, i32
  }
}

</mosaic_0001>

<llo_original>
// kernel: tpu_custom_call.1
$region0: #{tpu_custom_call.1}
  #allocation0 [shape = 'u32[]', space=smem, size = 0x4, offset = 0x4, fixed_abs, tag = 'smem constant byte address 0x4 - core index']
  #allocation1 [shape = 'u32[144,128]{1,0:T(1,128)}', space=vmem, size = 0x12000, scoped, tag = 'internal scratch']
  %s0 = inlined_call_operand.hbm [shape: f32[2,8,40], index: 0, kind: input, shape index: {}]
  %s1 = inlined_call_operand.hbm [shape: f32[40,128], index: 1, kind: input, shape index: {}]
  %s2 = inlined_call_operand.vmem [shape: f32[1,128], index: 2, kind: input, shape index: {}]
  %s3 = inlined_call_operand.vmem [shape: f32[1,128], index: 3, kind: input, shape index: {}]
  %s4 = inlined_call_operand.hbm [shape: f32[2,40], index: 4, kind: output, shape index: {0}]
  %s5 = inlined_call_operand.hbm [shape: f32[2,8], index: 5, kind: output, shape index: {1}]
  %6 = xla_tuple %s4, %s5
  %s7 = sld [smem:[#allocation0]]
  $region42: #{tpu_custom_call.1} parent=0
    _
  %s9 = ssub.s32 1, %s7
  %s10 = scalar_select 0, %s9, %s7
  $region1: #{tpu_custom_call.1} parent=0
    #allocation2 [shape = 'u8[8192]{0}', space=vmem, size = 0x2000, scoped, tag = 'input window, operand 0, single buffered']
    #allocation3 [shape = 's32[1]{0}', space=sflag, size = 0x4, scoped, tag = 'scoped memory for tpu_custom_call.1']
    #allocation4 [shape = 's32[1]{0}', space=sflag, size = 0x4, scoped, tag = 'scoped memory for tpu_custom_call.1']
    #allocation5 [shape = 'u8[20480]{0}', space=vmem, size = 0x5000, scoped, tag = 'input window, operand 1, single buffered']
    #allocation6 [shape = 's32[1]{0}', space=sflag, size = 0x4, scoped, tag = 'scoped memory for tpu_custom_call.1']
    #allocation7 [shape = 'u8[1024]{0}', space=vmem, size = 0x400, scoped, tag = 'output window, operand 0, single buffered']
    #allocation8 [shape = 'u8[1024]{0}', space=vmem, size = 0x400, scoped, tag = 'output window, operand 1, single buffered']
    #allocation9 [shape = 's32[1]{0}', space=sflag, size = 0x4, scoped, tag = 'scoped memory for tpu_custom_call.1']
    %11 = vsyncpa [#allocation3], 0
    %12 = vsyncpa [#allocation6], 0
    %13 = vsyncpa [#allocation4], 0
    %14 = vsyncpa [#allocation9], 0
    // Predicated region
    $region2: #{tpu_custom_call.1} parent=1 // pred_check
      _
    $region3: #{tpu_custom_call.1} parent=1 // pred_check_branch
      %16 = sbr.rel (0) target = $region5
    $region4: #{tpu_custom_call.1} parent=1 // pred_region
      %s18 = ssub.s32 256, 256
      %19 = vsyncadd [#allocation3], %s18
      %s20 = sshll.u32 [#allocation2], 4
      %s21 = int_to_ptr.vmem [resolvable:$true] %s20
      %26 = dma.hbm_to_vmem [thread:$0]  %s0, 256, %s21, [#allocation3], 128, 128, 8
    $region5: #{tpu_custom_call.1} parent=1 // pred_fallthru
      _
    // Predicated region
    $region6: #{tpu_custom_call.1} parent=1 // pred_check
      _
    $region7: #{tpu_custom_call.1} parent=1 // pred_check_branch
      %28 = sbr.rel (0) target = $region9
    $region8: #{tpu_custom_call.1} parent=1 // pred_region
      %s30 = ssub.s32 640, 640
      %31 = vsyncadd [#allocation6], %s30
      %s32 = sshll.u32 [#allocation5], 4
      %s33 = int_to_ptr.vmem [resolvable:$true] %s32
      %38 = dma.hbm_to_vmem [thread:$0]  %s1, 640, %s33, [#allocation6], 128, 128, 8
    $region9: #{tpu_custom_call.1} parent=1 // pred_fallthru
      _
    // Predicated region
    $region10: #{tpu_custom_call.1} parent=1 // pred_check
      _
    $region11: #{tpu_custom_call.1} parent=1 // pred_check_branch
      %40 = sbr.rel (0) target = $region13
    $region12: #{tpu_custom_call.1} parent=1 // pred_region
      _
    $region13: #{tpu_custom_call.1} parent=1 // pred_fallthru
      _
    // Predicated region
    $region14: #{tpu_custom_call.1} parent=1 // pred_check
      _
    $region15: #{tpu_custom_call.1} parent=1 // pred_check_branch
      %42 = sbr.rel (0) target = $region17
    $region16: #{tpu_custom_call.1} parent=1 // pred_region
      _
    $region17: #{tpu_custom_call.1} parent=1 // pred_fallthru
      _
    // Predicated region
    $region18: #{tpu_custom_call.1} parent=1 // pred_check
      _
    $region19: #{tpu_custom_call.1} parent=1 // pred_check_branch
      %44 = sbr.rel (0) target = $region21
    $region20: #{tpu_custom_call.1} parent=1 // pred_region
      %45 = dma.done [#allocation3], 256
    $region21: #{tpu_custom_call.1} parent=1 // pred_fallthru
      _
    // Predicated region
    $region22: #{tpu_custom_call.1} parent=1 // pred_check
      _
    $region23: #{tpu_custom_call.1} parent=1 // pred_check_branch
      %47 = sbr.rel (0) target = $region25
    $region24: #{tpu_custom_call.1} parent=1 // pred_region
      %48 = dma.done [#allocation6], 640
    $region25: #{tpu_custom_call.1} parent=1 // pred_fallthru
      _
    %v49 = vld [vmem:[#allocation2] sm:$0xff]
    %v50 = vld [vmem:[#allocation2 + $0x8] sm:$0xff]
    %v51 = vld [vmem:[#allocation5] sm:$0xff]
    %v52 = vld [vmem:[#allocation5 + $0x8] sm:$0xff]
    %v53 = vld [vmem:[#allocation5 + $0x10] sm:$0xff]
    %v54 = vld [vmem:[#allocation5 + $0x18] sm:$0xff]
    %v55 = vld [vmem:[#allocation5 + $0x20] sm:$0xff]
    %v56 = vld [vmem:[%s2] sm:$0x1]
    %v58 = vlaneseq
    %v59 = vshrl.u32 %v58, 7
    %v60 = vsub.s32 0, %v59
    %v61 = vrot.slane %v56, %v60
    %vm63 = vcmask 326656
    %v65 = vsel %vm63, %v49, 0
    %v68 = vsel %vm63, %v50, 0
    %70 = vmatprep.subr.mxu0 0.0
    %71 = vmatpush1.msra.mxu0 %v51
    %72 = vmatprep.subr.mxu0 0.0
    %73 = vmatpush1.msra.mxu0 %v52
    %74 = vmatprep.subr.mxu0 0.0
    %75 = vmatpush1.msra.mxu0 %v53
    %76 = vmatprep.subr.mxu0 0.0
    %77 = vmatpush1.msra.mxu0 %v54
    %78 = vmatprep.subr.mxu0 0.0
    %79 = vmatpush1.msra.mxu0 %v55
    %80 = vmatprep.subr.mxu0 0.0
    %81 = vmatpush1.msra.mxu0 0.0
    %82 = vmatprep.subr.mxu0 0.0
    %83 = vmatpush1.msra.mxu0 0.0
    %84 = vmatprep.subr.mxu0 0.0
    %85 = vmatpush1.msra.mxu0 0.0
    %86 = vmatprep.subr.mxu0 0.0
    %87 = vmatpush1.msra.mxu0 0.0
    %88 = vmatprep.subr.mxu0 0.0
    %89 = vmatpush1.msra.mxu0 0.0
    %90 = vmatprep.subr.mxu0 0.0
    %91 = vmatpush1.msra.mxu0 0.0
    %92 = vmatprep.subr.mxu0 0.0
    %93 = vmatpush1.msra.mxu0 0.0
    %94 = vmatprep.subr.mxu0 0.0
    %95 = vmatpush1.msra.mxu0 0.0
    %96 = vmatprep.subr.mxu0 0.0
    %97 = vmatpush1.msra.mxu0 0.0
    %98 = vmatprep.subr.mxu0 0.0
    %99 = vmatpush1.msra.mxu0 0.0
    %100 = vmatprep.subr.mxu0 0.0
    %101 = vmatpush1.msra.mxu0 0.0
    %102 = vmatprep.subr.mxu0 0.0
    %103 = vmatpush1.msra.mxu0 0.0
    %104 = vmatprep.subr.mxu0 0.0
    %105 = vmatpush1.msra.mxu0 0.0
    %106 = vmatprep.subr.mxu0 0.0
    %107 = vmatpush1.msra.mxu0 0.0
    %108 = vmatprep.subr.mxu0 0.0
    %109 = vmatpush1.msra.mxu0 0.0
    %110 = vmatprep.subr.mxu0 0.0
    %111 = vmatpush1.msra.mxu0 0.0
    %112 = vmatprep.subr.mxu0 0.0
    %113 = vmatpush1.msra.mxu0 0.0
    %114 = vmatprep.subr.mxu0 0.0
    %115 = vmatpush1.msra.mxu0 0.0
    %116 = vmatprep.subr.mxu0 0.0
    %117 = vmatpush1.msra.mxu0 0.0
    %118 = vmatprep.subr.mxu0 0.0
    %119 = vmatpush1.msra.mxu0 0.0
    %120 = vmatprep.subr.mxu0 0.0
    %121 = vmatpush1.msra.mxu0 0.0
    %122 = vmatprep.subr.mxu0 0.0
    %123 = vmatpush1.msra.mxu0 0.0
    %124 = vmatprep.subr.mxu0 0.0
    %125 = vmatpush1.msra.mxu0 0.0
    %126 = vmatprep.subr.mxu0 0.0
    %127 = vmatpush1.msra.mxu0 0.0
    %128 = vmatprep.subr.mxu0 0.0
    %129 = vmatpush1.msra.mxu0 0.0
    %130 = vmatprep.subr.mxu0 0.0
    %131 = vmatpush1.msra.mxu0 0.0
    %132 = vmatprep.subr.mxu0 0.0
    %133 = vmatpush1.msra.mxu0 0.0
    %134 = vmatprep.mubr.f32.mxu0 0.0
    %135 = vmatmul.mubr.f32.gmra.mrb[0].mxu0 %v65
    %v136 = vpop.f32.mrb[0].mxu0
    %v137 = vadd.f32 %v61, %v136
    %v138 = vpop.f32.mrb[0].mxu0
    %139 = vmatprep.mubr.f32.mxu0 0.0
    %140 = vmatmul.mubr.f32.gmra.mrb[0].mxu0 %v68
    %v141 = vpop.f32.mrb[0].mxu0
    %v142 = vadd.f32 %v61, %v141
    %v143 = vpop.f32.mrb[0].mxu0
    %144 = vdwg.mxu0
    %v145 = vmax.f32 %v137, 0.0
    %v146 = vmax.f32 %v142, 0.0
    %v147 = vld [vmem:[%s3] sm:$0x1]
    %v149 = vlaneseq
    %v150 = vshrl.u32 %v149, 7
    %v151 = vsub.s32 0, %v150
    %v152 = vrot.slane %v147, %v151
    %v154 = vmul.f32 %v145, %v152
    %v155 = vmul.f32 %v146, %v152
    %156 = vadd.xlane.f32.xlu0 %v154
    %v157 = vpop.xlane.xlu0 %156
    %158 = vadd.xlane.f32.xlu0 %v155
    %v159 = vpop.xlane.xlu0 %158
    %v162 = vlaneseq
    %v163 = vand.u32 %v162, 127
    %v164 = vlaneseq
    %v165 = vshrl.u32 %v164, 7
    %v166 = vsub.s32 %v163, %v165
    %v167 = vrot.slane %v157, %v166
    %v168 = vlaneseq
    %v169 = vshrl.u32 %v168, 7
    %v170 = vsub.s32 %v163, %v169
    %v171 = vrot.slane %v159, %v170
    %vm172 = vcmask 1041409
    %v173 = vsel %vm172, %v171, %v167
    %vm175 = vcmask 58368
    %v176 = vsel %vm175, %v173, -inf
    %177 = vmax.xlane.f32.xlu0 %v176
    %v178 = vpop.xlane.xlu0 %177
    %v180 = vlaneseq
    %v181 = vshrl.u32 %v180, 7
    %v182 = vsub.s32 0, %v181
    %v183 = vrot.slane %v178, %v182
    %v184 = vlaneseq
    %v185 = vshrl.u32 %v184, 7
    %v186 = vsub.s32 1, %v185
    %v187 = vrot.slane %v178, %v186
    %v190 = vsub.f32 %v157, %v183
    %v191 = vsub.f32 %v159, %v187
    %v192 = vmul.f32 %v190, 1.442695
    %v193 = vpow.pop %v192
    %v194 = vmul.f32 %v191, 1.442695
    %v195 = vpow.pop %v194
    %198 = vset.pattern.permute.xlu0 0
    %199 = vperm.xlu0 %198, %v193
    %v200 = vpop.permute.xlu0 %199
    %201 = vset.pattern.permute.xlu0 0
    %202 = vperm.xlu0 %201, %v195
    %v203 = vpop.permute.xlu0 %202
    %v204 = vlaneseq
    %v205 = vshrl.u32 %v204, 7
    %v206 = vsub.s32 %v163, %v205
    %v207 = vrot.slane %v200, %v206
    %v208 = vlaneseq
    %v209 = vshrl.u32 %v208, 7
    %v210 = vsub.s32 %v163, %v209
    %v211 = vrot.slane %v203, %v210
    %v212 = vsel %vm172, %v211, %v207
    %v214 = vsel %vm175, %v212, 0.0
    %215 = vadd.xlane.f32.xlu0 %v214
    %v216 = vpop.xlane.xlu0 %215
    %v217 = vrcp.pop %v216
    %v219 = vlaneseq
    %v220 = vshrl.u32 %v219, 7
    %v221 = vsub.s32 0, %v220
    %v222 = vrot.slane %v217, %v221
    %v223 = vlaneseq
    %v224 = vshrl.u32 %v223, 7
    %v225 = vsub.s32 1, %v224
    %v226 = vrot.slane %v217, %v225
    %v229 = vmul.f32 %v193, %v222
    %v230 = vmul.f32 %v195, %v226
    %233 = vset.pattern.permute.xlu0 0
    %234 = vperm.xlu0 %233, %v229
    %v235 = vpop.permute.xlu0 %234
    %236 = vset.pattern.permute.xlu0 0
    %237 = vperm.xlu0 %236, %v230
    %v238 = vpop.permute.xlu0 %237
    %v239 = vlaneseq
    %v240 = vshrl.u32 %v239, 7
    %v241 = vsub.s32 %v163, %v240
    %v242 = vrot.slane %v235, %v241
    %v243 = vlaneseq
    %v244 = vshrl.u32 %v243, 7
    %v245 = vsub.s32 %v163, %v244
    %v246 = vrot.slane %v238, %v245
    %v247 = vsel %vm172, %v246, %v242
    %249 = vst.msk [vmem:[#allocation8] sm:$0x3] %vm175, %v247
    %v252 = vmul.f32 %v49, %v235
    %v253 = vmul.f32 %v50, %v238
    %v254 = vsel %vm63, %v252, 0.0
    %v255 = vrot.slane %v254, 4
    %v256 = vadd.f32 %v254, %v255
    %v257 = vrot.slane %v256, 2
    %v258 = vadd.f32 %v256, %v257
    %v259 = vrot.slane %v258, 1
    %v260 = vadd.f32 %v258, %v259
    %v261 = vsel %vm63, %v253, 0.0
    %v262 = vrot.slane %v261, 4
    %v263 = vadd.f32 %v261, %v262
    %v264 = vrot.slane %v263, 2
    %v265 = vadd.f32 %v263, %v264
    %v266 = vrot.slane %v265, 1
    %v267 = vadd.f32 %v265, %v266
    %v270 = vsel %vm172, %v267, %v260
    %vm272 = vcmask 320512
    %273 = vst.msk [vmem:[#allocation7] sm:$0x3] %vm272, %v270
    // Predicated region
    $region26: #{tpu_custom_call.1} parent=1 // pred_check
      _
    $region27: #{tpu_custom_call.1} parent=1 // pred_check_branch
      %275 = sbr.rel (0) target = $region29
    $region28: #{tpu_custom_call.1} parent=1 // pred_region
      %s277 = ssub.s32 32, 32
      %278 = vsyncadd [#allocation4], %s277
      %s280 = sshll.u32 [#allocation7], 4
      %s281 = int_to_ptr.vmem [resolvable:$true] %s280
      %283 = dma.vmem_to_hbm [thread:$0]  %s281, 32, %s4, [#allocation4]
    $region29: #{tpu_custom_call.1} parent=1 // pred_fallthru
      _
    // Predicated region
    $region30: #{tpu_custom_call.1} parent=1 // pred_check
      _
    $region31: #{tpu_custom_call.1} parent=1 // pred_check_branch
      %285 = sbr.rel (0) target = $region33
    $region32: #{tpu_custom_call.1} parent=1 // pred_region
      %s287 = ssub.s32 32, 32
      %288 = vsyncadd [#allocation9], %s287
      %s290 = sshll.u32 [#allocation8], 4
      %s291 = int_to_ptr.vmem [resolvable:$true] %s290
      %293 = dma.vmem_to_hbm [thread:$0]  %s291, 32, %s5, [#allocation9]
    $region33: #{tpu_custom_call.1} parent=1 // pred_fallthru
      _
    // Predicated region
    $region34: #{tpu_custom_call.1} parent=1 // pred_check
      _
    $region35: #{tpu_custom_call.1} parent=1 // pred_check_branch
      %295 = sbr.rel (0) target = $region37
    $region36: #{tpu_custom_call.1} parent=1 // pred_region
      %296 = dma.done [#allocation4], 32
    $region37: #{tpu_custom_call.1} parent=1 // pred_fallthru
      _
    // Predicated region
    $region38: #{tpu_custom_call.1} parent=1 // pred_check
      _
    $region39: #{tpu_custom_call.1} parent=1 // pred_check_branch
      %298 = sbr.rel (0) target = $region41
    $region40: #{tpu_custom_call.1} parent=1 // pred_region
      %299 = dma.done [#allocation9], 32
    $region41: #{tpu_custom_call.1} parent=1 // pred_fallthru
      _
    %300 = vsyncpa [#allocation3], 1
    %301 = vsyncpa [#allocation6], 1
    %302 = vsyncpa [#allocation4], 1
    %303 = vsyncpa [#allocation9], 1

</llo_original>
